<compile_context>
chip_gen: v7x
topology: tpu7x:2x2x1
jax: 0.10.0
libtpu: 0.0.40
codegen_flags: <defaults>
</compile_context>

<pallas_src>
import functools

import jax
import jax.numpy as jnp
from jax.experimental import pallas as pl
from jax.experimental.pallas import tpu as pltpu

LANES = 128
NCORES = 2  # split the reduction across TensorCores (v7x); harmless on 1-TC chips


def _round_up(x, m):
    return ((x + m - 1) // m) * m


def _pinball_kernel(x_ref, t_ref, out_ref, acc_ref, *, q_sum, n_q):
    """Accumulate sum_q[(t - x) * q + relu(x - t)] over one (tm, 128) tile.

    Uses the identity  sum_q(diff*q + relu) == diff * q_sum + n_q * relu,
    so each element costs one mul + one madd on the VPU.

    x_ref, t_ref : VMEM (tm, 128)            input tiles
    out_ref      : VMEM (1, 128)             per-core lane-dense partial sums
    acc_ref      : VMEM (8, 128) float32     running accumulator (persists across grid)
    """
    j = pl.program_id(1)

    @pl.when(j == 0)
    def _():
        acc_ref[...] = jnp.zeros_like(acc_ref)

    x = x_ref[...].astype(jnp.float32)
    t = t_ref[...].astype(jnp.float32)

    diff = t - x                             # (actual - predicted)
    relu = jnp.maximum(x - t, 0.0)           # relu(predicted - actual)
    contrib = diff * q_sum + relu * n_q      # == sum over quantiles of the error

    tm = x_ref.shape[0]
    # Fold rows into the (8, 128) vreg-shaped accumulator with plain VALU adds.
    acc_ref[...] += contrib.reshape(tm // 8, 8, LANES).sum(axis=0)

    @pl.when(j == pl.num_programs(1) - 1)
    def _():
        # One sublane reduce per core; cross-lane reduce happens in the wrapper.
        out_ref[...] = jnp.sum(acc_ref[...], axis=0, keepdims=True)


def pinball_loss_pallas(quantiles, predicted, actual, *, tm=1024):
    """Pinball loss computed by a Pallas TPU kernel. Returns a float32 scalar."""
    quantiles = [float(q) for q in quantiles]       # compile-time constants
    n_q = len(quantiles)
    q_sum = float(sum(quantiles))

    assert predicted.shape == actual.shape
    numel = predicted.size

    x = predicted.reshape(-1)
    t = actual.reshape(-1)

    rows = pl.cdiv(numel, LANES)
    # tm must be a multiple of 16 (covers both f32 (8,128) and bf16 (16,128) tiling);
    # shrink it for small inputs so padding stays negligible.
    tm = max(16, min(_round_up(tm, 16), _round_up(pl.cdiv(rows, NCORES), 16)))

    rows_padded = _round_up(rows, NCORES * tm)
    pad = rows_padded * LANES - numel
    if pad:
        # Zero-padding both tensors contributes exactly zero (diff = relu = 0).
        x = jnp.pad(x, (0, pad))
        t = jnp.pad(t, (0, pad))

    x2d = x.reshape(rows_padded, LANES)
    t2d = t.reshape(rows_padded, LANES)

    steps = rows_padded // (NCORES * tm)
    kernel = functools.partial(_pinball_kernel, q_sum=q_sum, n_q=float(n_q))

    partials = pl.pallas_call(
        kernel,
        out_shape=jax.ShapeDtypeStruct((1, NCORES * LANES), jnp.float32),
        grid_spec=pltpu.PrefetchScalarGridSpec(
            num_scalar_prefetch=0,
            grid=(NCORES, steps),
            in_specs=[
                pl.BlockSpec((tm, LANES), lambda i, j: (i * steps + j, 0)),
                pl.BlockSpec((tm, LANES), lambda i, j: (i * steps + j, 0)),
            ],
            out_specs=pl.BlockSpec((1, LANES), lambda i, j: (0, i)),
            scratch_shapes=[pltpu.VMEM((8, LANES), jnp.float32)],
        ),
        compiler_params=pltpu.CompilerParams(
            dimension_semantics=("parallel", "arbitrary"),
        ),
    )(x2d, t2d)

    denom = float(n_q) * float(numel)
    return jnp.sum(partials) / denom


def pinball_loss_ref(quantiles, predicted, actual):
    """Pure-JAX reference mirroring the PyTorch implementation."""
    errors = [
        (actual - predicted) * q + jax.nn.relu(predicted - actual)
        for q in quantiles
    ]
    return (sum(errors) / len(quantiles)).mean()


if __name__ == "__main__":
    key = jax.random.PRNGKey(0)
    k1, k2 = jax.random.split(key)

    # Elementwise loss, so NCHW-like inputs work: (batch=2, channels=4, H=16, W=16).
    x = jax.random.normal(k1, (2, 4, 16, 16), dtype=jnp.float32)   # predictions
    t = jax.random.normal(k2, (2, 4, 16, 16), dtype=jnp.float32)   # targets

    quantiles = [0.1, 0.5, 0.9]

    loss = pinball_loss_pallas(quantiles, x, t)
    loss = jax.block_until_ready(loss)

    ref = pinball_loss_ref(quantiles, x, t)
    assert jnp.allclose(loss, ref, rtol=1e-5, atol=1e-6), (loss, ref)

    print("KERNEL_OK")
</pallas_src>

<mosaic_0001>
module attributes {stable_mosaic.version = 11 : i64} {
  func.func @_pinball_kernel(%arg0: i32, %arg1: i32, %arg2: memref<16x128xf32, #tpu.memory_space<vmem>>, %arg3: memref<16x128xf32, #tpu.memory_space<vmem>>, %arg4: memref<1x128xf32, #tpu.memory_space<vmem>>, %arg5: memref<8x128xf32, #tpu.memory_space<vmem>>) attributes {dimension_semantics = [#tpu.dimension_semantics<parallel>, #tpu.dimension_semantics<arbitrary>], iteration_bounds = array<i64: 2, 1>, scalar_prefetch = 0 : i64, scratch_operands = 1 : i64, tpu.core_type = #tpu.core_type<tc>, window_params = [{transform_indices = @transform_0, window_bounds = array<i64: 16, 128>}, {transform_indices = @transform_1, window_bounds = array<i64: 16, 128>}, {transform_indices = @transform_2, window_bounds = array<i64: 1, 128>}]} {
    %c0_i32 = arith.constant 0 : i32
    %0 = arith.cmpi eq, %arg1, %c0_i32 : i32
    %1 = arith.extui %0 : i1 to i32
    %c0_i32_0 = arith.constant 0 : i32
    %2 = arith.cmpi ne, %1, %c0_i32_0 : i32
    scf.if %2 {
      %cst_13 = arith.constant 0.000000e+00 : f32
      %22 = vector.broadcast %cst_13 : f32 to vector<8x128xf32>
      %c0_14 = arith.constant 0 : index
      %c0_15 = arith.constant 0 : index
      %23 = vector.load %arg5[%c0_14, %c0_15] : memref<8x128xf32, #tpu.memory_space<vmem>>, vector<8x128xf32>
      tpu.vector_store %arg5[%c0_14, %c0_15], %22 {strides = array<i32>} : memref<8x128xf32, #tpu.memory_space<vmem>>, vector<8x128xf32>,
    } else {
    }
    %c0 = arith.constant 0 : index
    %c0_1 = arith.constant 0 : index
    %3 = vector.load %arg2[%c0, %c0_1] : memref<16x128xf32, #tpu.memory_space<vmem>>, vector<16x128xf32>
    %c0_2 = arith.constant 0 : index
    %c0_3 = arith.constant 0 : index
    %4 = vector.load %arg3[%c0_2, %c0_3] : memref<16x128xf32, #tpu.memory_space<vmem>>, vector<16x128xf32>
    %5 = arith.subf %4, %3 : vector<16x128xf32>
    %6 = arith.subf %3, %4 : vector<16x128xf32>
    %cst = arith.constant 0.000000e+00 : f32
    %7 = vector.broadcast %cst : f32 to vector<16x128xf32>
    %8 = arith.maximumf %6, %7 : vector<16x128xf32>
    %cst_4 = arith.constant 1.500000e+00 : f32
    %9 = vector.broadcast %cst_4 : f32 to vector<16x128xf32>
    %10 = arith.mulf %5, %9 : vector<16x128xf32>
    %cst_5 = arith.constant 3.000000e+00 : f32
    %11 = vector.broadcast %cst_5 : f32 to vector<16x128xf32>
    %12 = arith.mulf %8, %11 : vector<16x128xf32>
    %13 = arith.addf %10, %12 : vector<16x128xf32>
    %c0_6 = arith.constant 0 : index
    %c0_7 = arith.constant 0 : index
    %14 = vector.load %arg5[%c0_6, %c0_7] : memref<8x128xf32, #tpu.memory_space<vmem>>, vector<8x128xf32>
    %15 = vector.shape_cast %13 : vector<16x128xf32> to vector<2x8x128xf32>
    %cst_8 = arith.constant dense<0.000000e+00> : vector<8x128xf32>
    %16 = vector.multi_reduction <add>, %15, %cst_8 [0] : vector<2x8x128xf32> to vector<8x128xf32>
    %17 = arith.addf %14, %16 : vector<8x128xf32>
    %c0_9 = arith.constant 0 : index
    %c0_10 = arith.constant 0 : index
    %18 = vector.load %arg5[%c0_9, %c0_10] : memref<8x128xf32, #tpu.memory_space<vmem>>, vector<8x128xf32>
    tpu.vector_store %arg5[%c0_9, %c0_10], %17 {strides = array<i32>} : memref<8x128xf32, #tpu.memory_space<vmem>>, vector<8x128xf32>,
    %c0_i32_11 = arith.constant 0 : i32
    %19 = arith.cmpi eq, %arg1, %c0_i32_11 : i32
    %20 = arith.extui %19 : i1 to i32
    %c0_i32_12 = arith.constant 0 : i32
    %21 = arith.cmpi ne, %20, %c0_i32_12 : i32
    scf.if %21 {
      %c0_13 = arith.constant 0 : index
      %c0_14 = arith.constant 0 : index
      %22 = vector.load %arg5[%c0_13, %c0_14] : memref<8x128xf32, #tpu.memory_space<vmem>>, vector<8x128xf32>
      %cst_15 = arith.constant dense<0.000000e+00> : vector<128xf32>
      %23 = vector.multi_reduction <add>, %22, %cst_15 [0] : vector<8x128xf32> to vector<128xf32>
      %24 = vector.shape_cast %23 : vector<128xf32> to vector<1x128xf32>
      %c0_16 = arith.constant 0 : index
      %c0_17 = arith.constant 0 : index
      %25 = vector.load %arg4[%c0_16, %c0_17] : memref<1x128xf32, #tpu.memory_space<vmem>>, vector<1x128xf32>
      tpu.vector_store %arg4[%c0_16, %c0_17], %24 {strides = array<i32>} : memref<1x128xf32, #tpu.memory_space<vmem>>, vector<1x128xf32>,
    } else {
    }
    return
  }
  func.func @transform_0(%arg0: i32, %arg1: i32) -> (i32, i32) {
    %c1_i32 = arith.constant 1 : i32
    %0 = arith.muli %arg0, %c1_i32 : i32
    %1 = arith.addi %0, %arg1 : i32
    %c0_i32 = arith.constant 0 : i32
    %c0_i32_0 = arith.constant 0 : i32
    return %1, %c0_i32 : i32, i32
  }
  func.func @transform_1(%arg0: i32, %arg1: i32) -> (i32, i32) {
    %c1_i32 = arith.constant 1 : i32
    %0 = arith.muli %arg0, %c1_i32 : i32
    %1 = arith.addi %0, %arg1 : i32
    %c0_i32 = arith.constant 0 : i32
    %c0_i32_0 = arith.constant 0 : i32
    return %1, %c0_i32 : i32, i32
  }
  func.func @transform_2(%arg0: i32, %arg1: i32) -> (i32, i32) {
    %c0_i32 = arith.constant 0 : i32
    %c0_i32_0 = arith.constant 0 : i32
    return %c0_i32, %arg0 : i32, i32
  }
}

</mosaic_0001>

<llo_original>
// kernel: tpu_custom_call.1
$region0: #{tpu_custom_call.1}
  #allocation0 [shape = 'u32[]', space=smem, size = 0x4, offset = 0x4, fixed_abs, tag = 'smem constant byte address 0x4 - core index']
  #allocation1 [shape = 'u32[144,128]{1,0:T(1,128)}', space=vmem, size = 0x12000, scoped, tag = 'internal scratch']
  #allocation2 [shape = 'f32[8,128]{1,0:T(8,128)}', space=vmem, size = 0x1000, scoped, tag = 'scratch operand']
  %s0 = inlined_call_operand.hbm [shape: f32[32,128], index: 0, kind: input, shape index: {}]
  %s1 = inlined_call_operand.hbm [shape: f32[32,128], index: 1, kind: input, shape index: {}]
  %s2 = inlined_call_operand.hbm [shape: f32[1,256], index: 2, kind: output, shape index: {}]
  %s3 = sld [smem:[#allocation0]]
  $region57: #{tpu_custom_call.1} parent=0
    _
  %s5 = ssub.s32 1, %s3
  %s6 = scalar_select 0, %s5, %s3
  $region1: #{tpu_custom_call.1} parent=0
    #allocation3 [shape = 'u8[16384]{0}', space=vmem, size = 0x4000, scoped, tag = 'input window, operand 0']
    #allocation4 [shape = 's32[2]{0}', space=sflag, size = 0x8, scoped, tag = 'scoped memory for tpu_custom_call.1']
    #allocation5 [shape = 's32[2]{0}', space=sflag, size = 0x8, scoped, tag = 'scoped memory for tpu_custom_call.1']
    #allocation6 [shape = 'u8[16384]{0}', space=vmem, size = 0x4000, scoped, tag = 'input window, operand 1']
    #allocation7 [shape = 's32[2]{0}', space=sflag, size = 0x8, scoped, tag = 'scoped memory for tpu_custom_call.1']
    #allocation8 [shape = 'u8[1024]{0}', space=vmem, size = 0x400, scoped, tag = 'output window, operand 0']
    %7 = vsyncpa [#allocation4], 0
    %s8 = scalar_lea.sflag [#allocation4], 1
    %9 = vsyncpa %s8, 0
    %10 = vsyncpa [#allocation7], 0
    %s11 = scalar_lea.sflag [#allocation7], 1
    %12 = vsyncpa %s11, 0
    %13 = vsyncpa [#allocation5], 0
    %s14 = scalar_lea.sflag [#allocation5], 1
    %15 = vsyncpa %s14, 0
    loop: start=0, step=1, limit=4
    $region2: #{tpu_custom_call.1} parent=1 // loop_pre_header
      _
    $region3: #{tpu_custom_call.1} parent=1 // loop_header
      %s17 = sphi 0, %s21
      %p18 = scmp.ge.s32.totalorder %s17, 4
      %s24 = sphi 0, %s36
      %s25 = sphi 0, %s32
      %s26 = sphi 0, %s24
      %s27 = sphi 0, %s25
      %s28 = sphi 0, %s26
      %s29 = sphi 0, %s27
      %s41 = sphi 0, %s43
      %s44 = sphi 0, %s41
      %s45 = sphi 0, %s44
      %s61 = sphi 0, %s45
      %s69 = sphi 0, %s71
      %s72 = sphi 0, %s69
      %s73 = sphi 0, %s72
      %s89 = sphi 0, %s73
      %s95 = sphi 0, %s97
      %s98 = sphi 0, %s95
      %s99 = sphi 0, %s98
      %s115 = sphi 0, %s99
    $region4: #{tpu_custom_call.1} parent=1 // loop_header_branch
      %20 = sbr.rel (%p18) target = $region8
    $region5: #{tpu_custom_call.1} parent=1 // loop_body
      %s22 = ssub.s32 %s17, 1
      %s23 = ssub.s32 %s17, 2
      %s30 = sadd.s32 1, %s25
      %p31 = scmp.ge.s32.totalorder %s30, 1
      %s32 = scalar_select %p31, 0, %s30
      %s33 = sadd.s32 1, %s24
      %s34 = scalar_select %p31, %s33, %s24
      %p35 = scmp.ge.s32.totalorder %s34, 2
      %s36 = scalar_select %p35, 0, %s34
      %s37 = sadd.s32 %s24, %s25
      %s38 = sadd.s32 %s36, %s32
      %s39 = ssub.s32 %s37, %s38
      %p40 = scmp.eq.s32.totalorder %s39, 0
      %s42 = sadd.s32 %s41, 1
      %s43 = scalar_select %p40, %s41, %s42
      %p46 = pneg %p40
      %p47 = scmp.eq.s32.totalorder %s17, 1
      %p48 = por %p46, %p47
      %p49 = scmp.ne.s32.totalorder %s41, %s44
      %p50 = scmp.eq.s32.totalorder %s17, 0
      %p51 = por %p49, %p50
      %p52 = scmp.ne.s32.totalorder %s41, %s44
      %p53 = scmp.eq.s32.totalorder %s22, 1
      %p54 = por %p52, %p53
      %p55 = scmp.ne.s32.totalorder %s44, %s45
      %p56 = scmp.eq.s32.totalorder %s22, 0
      %p57 = por %p55, %p56
      %p58 = scmp.ne.s32.totalorder %s44, %s45
      %p59 = scmp.eq.s32.totalorder %s23, 1
      %p60 = por %p58, %p59
      %p62 = scmp.ne.s32.totalorder %s45, %s61
      %p63 = scmp.eq.s32.totalorder %s23, 0
      %p64 = por %p62, %p63
      %s65 = sadd.s32 %s24, %s25
      %s66 = sadd.s32 %s36, %s32
      %s67 = ssub.s32 %s65, %s66
      %p68 = scmp.eq.s32.totalorder %s67, 0
      %s70 = sadd.s32 %s69, 1
      %s71 = scalar_select %p68, %s69, %s70
      %p74 = pneg %p68
      %p75 = scmp.eq.s32.totalorder %s17, 1
      %p76 = por %p74, %p75
      %p77 = scmp.ne.s32.totalorder %s69, %s72
      %p78 = scmp.eq.s32.totalorder %s17, 0
      %p79 = por %p77, %p78
      %p80 = scmp.ne.s32.totalorder %s69, %s72
      %p81 = scmp.eq.s32.totalorder %s22, 1
      %p82 = por %p80, %p81
      %p83 = scmp.ne.s32.totalorder %s72, %s73
      %p84 = scmp.eq.s32.totalorder %s22, 0
      %p85 = por %p83, %p84
      %p86 = scmp.ne.s32.totalorder %s72, %s73
      %p87 = scmp.eq.s32.totalorder %s23, 1
      %p88 = por %p86, %p87
      %p90 = scmp.ne.s32.totalorder %s73, %s89
      %p91 = scmp.eq.s32.totalorder %s23, 0
      %p92 = por %p90, %p91
      %s93 = ssub.s32 %s24, %s36
      %p94 = scmp.eq.s32.totalorder %s93, 0
      %s96 = sadd.s32 %s95, 1
      %s97 = scalar_select %p94, %s95, %s96
      %p100 = pneg %p94
      %p101 = scmp.eq.s32.totalorder %s17, 1
      %p102 = por %p100, %p101
      %p103 = scmp.ne.s32.totalorder %s95, %s98
      %p104 = scmp.eq.s32.totalorder %s17, 0
      %p105 = por %p103, %p104
      %p106 = scmp.ne.s32.totalorder %s95, %s98
      %p107 = scmp.eq.s32.totalorder %s22, 1
      %p108 = por %p106, %p107
      %p109 = scmp.ne.s32.totalorder %s98, %s99
      %p110 = scmp.eq.s32.totalorder %s22, 0
      %p111 = por %p109, %p110
      %p112 = scmp.ne.s32.totalorder %s98, %s99
      %p113 = scmp.eq.s32.totalorder %s23, 1
      %p114 = por %p112, %p113
      %p116 = scmp.ne.s32.totalorder %s99, %s115
      %p117 = scmp.eq.s32.totalorder %s23, 0
      %p118 = por %p116, %p117
      %p119 = scmp.le.s32.totalorder 1, %s17
      %p120 = scmp.lt.s32.totalorder %s17, 3
      %p121 = pnand %p119, %p120
      %p122 = pneg %p121
      // Predicated region
      $region9: #{tpu_custom_call.1} parent=5 // pred_check
        _
      $region10: #{tpu_custom_call.1} parent=5 // pred_check_branch
        %124 = sbr.rel (%p121) target = $region12
      $region11: #{tpu_custom_call.1} parent=5 // pred_region
        %s125 = ssub.s32 %s17, 1
      $region12: #{tpu_custom_call.1} parent=5 // pred_fallthru
        _
      %p126 = scmp.lt.s32.totalorder %s17, 2
      // Predicated region
      $region13: #{tpu_custom_call.1} parent=5 // pred_check
        %p127 = pneg %p126
      $region14: #{tpu_custom_call.1} parent=5 // pred_check_branch
        %129 = sbr.rel (%p127) target = $region16
      $region15: #{tpu_custom_call.1} parent=5 // pred_region
        // Predicated region
        $region17: #{tpu_custom_call.1} parent=15 // pred_check
          %p130 = pneg %p51
        $region18: #{tpu_custom_call.1} parent=15 // pred_check_branch
          %132 = sbr.rel (%p130) target = $region20
        $region19: #{tpu_custom_call.1} parent=15 // pred_region
          %s133 = sand.u32 %s41, 1
          %s134 = scalar_lea.sflag [#allocation4], %s133
          %s135 = sand.u32 %s41, 1
          %s136 = smul.addr %s135, 16
          %s137 = scalar_lea.vmem [#allocation3], %s136
          %s138 = sadd.s32 %s24, %s25
          %s139 = smul.u32 2, %s138
          %s141 = ssub.s32 256, 256
          %142 = vsyncadd %s134, %s141
          %s143 = smul.addr %s139, 128
          %s144 = scalar_lea.hbm %s0, %s143
          %s145 = sshll.u32 %s137, 4
          %s146 = int_to_ptr.vmem [resolvable:$true] %s145
          %151 = dma.hbm_to_vmem [thread:$0]  %s144, 256, %s146, %s134, 128, 128, 8
        $region20: #{tpu_custom_call.1} parent=15 // pred_fallthru
          _
        // Predicated region
        $region21: #{tpu_custom_call.1} parent=15 // pred_check
          %p152 = pneg %p79
        $region22: #{tpu_custom_call.1} parent=15 // pred_check_branch
          %154 = sbr.rel (%p152) target = $region24
        $region23: #{tpu_custom_call.1} parent=15 // pred_region
          %s155 = sand.u32 %s69, 1
          %s156 = scalar_lea.sflag [#allocation7], %s155
          %s157 = sand.u32 %s69, 1
          %s158 = smul.addr %s157, 16
          %s159 = scalar_lea.vmem [#allocation6], %s158
          %s160 = sadd.s32 %s24, %s25
          %s161 = smul.u32 2, %s160
          %s163 = ssub.s32 256, 256
          %164 = vsyncadd %s156, %s163
          %s165 = smul.addr %s161, 128
          %s166 = scalar_lea.hbm %s1, %s165
          %s167 = sshll.u32 %s159, 4
          %s168 = int_to_ptr.vmem [resolvable:$true] %s167
          %173 = dma.hbm_to_vmem [thread:$0]  %s166, 256, %s168, %s156, 128, 128, 8
        $region24: #{tpu_custom_call.1} parent=15 // pred_fallthru
          _
      $region16: #{tpu_custom_call.1} parent=5 // pred_fallthru
        _
      %p174 = scmp.le.s32.totalorder 1, %s17
      %p175 = scmp.lt.s32.totalorder %s17, 3
      %p176 = pnand %p174, %p175
      %p177 = pneg %p176
      // Predicated region
      $region25: #{tpu_custom_call.1} parent=5 // pred_check
        _
      $region26: #{tpu_custom_call.1} parent=5 // pred_check_branch
        %179 = sbr.rel (%p176) target = $region28
      $region27: #{tpu_custom_call.1} parent=5 // pred_region
        %s180 = ssub.s32 %s17, 1
        %s181 = sand.u32 %s44, 1
        %s182 = scalar_lea.sflag [#allocation4], %s181
        %s183 = sand.u32 %s44, 1
        %s184 = smul.addr %s183, 16
        %s185 = scalar_lea.vmem [#allocation3], %s184
        // Predicated region
        $region29: #{tpu_custom_call.1} parent=27 // pred_check
          %p186 = pneg %p57
        $region30: #{tpu_custom_call.1} parent=27 // pred_check_branch
          %188 = sbr.rel (%p186) target = $region32
        $region31: #{tpu_custom_call.1} parent=27 // pred_region
          %189 = dma.done %s182, 256
        $region32: #{tpu_custom_call.1} parent=27 // pred_fallthru
          _
        %s190 = sand.u32 %s72, 1
        %s191 = scalar_lea.sflag [#allocation7], %s190
        %s192 = sand.u32 %s72, 1
        %s193 = smul.addr %s192, 16
        %s194 = scalar_lea.vmem [#allocation6], %s193
        // Predicated region
        $region33: #{tpu_custom_call.1} parent=27 // pred_check
          %p195 = pneg %p85
        $region34: #{tpu_custom_call.1} parent=27 // pred_check_branch
          %197 = sbr.rel (%p195) target = $region36
        $region35: #{tpu_custom_call.1} parent=27 // pred_region
          %198 = dma.done %s191, 256
        $region36: #{tpu_custom_call.1} parent=27 // pred_fallthru
          _
        %s199 = sand.u32 %s44, 1
        %s200 = scalar_lea.sflag [#allocation4], %s199
        %s201 = sand.u32 %s44, 1
        %s202 = smul.addr %s201, 16
        %s203 = scalar_lea.vmem [#allocation3], %s202
        %p204 = pneg %p57
        %p205 = pneg %p54
        %s206 = sand.u32 %s72, 1
        %s207 = scalar_lea.sflag [#allocation7], %s206
        %s208 = sand.u32 %s72, 1
        %s209 = smul.addr %s208, 16
        %s210 = scalar_lea.vmem [#allocation6], %s209
        %p211 = pneg %p85
        %p212 = pneg %p82
        %p213 = pneg %p111
        %p214 = pneg %p108
        %s215 = sand.u32 %s98, 1
        %s216 = scalar_lea.sflag [#allocation5], %s215
        %s217 = sand.u32 %s98, 1
        %s218 = scalar_lea.vmem [#allocation8], %s217
        %s219 = sadd.s32 %s26, %s27
        %s220 = smul.u32 2, %s219
        %s221 = sadd.s32 %s26, %s27
        %s222 = smul.u32 2, %s221
        %p223 = scmp.eq.s32.totalorder %s27, 0
        // Predicated region
        $region37: #{tpu_custom_call.1} parent=27 // pred_check
          %p224 = pneg %p223
        $region38: #{tpu_custom_call.1} parent=27 // pred_check_branch
          %226 = sbr.rel (%p224) target = $region40
        $region39: #{tpu_custom_call.1} parent=27 // pred_region
          %227 = vst [vmem:[#allocation2] sm:$0xff] 0.0
        $region40: #{tpu_custom_call.1} parent=27 // pred_fallthru
          _
        %v228 = vld [vmem:[%s185] sm:$0xff]
        %v229 = vld [vmem:[%s185 + $0x8] sm:$0xff]
        %v230 = vld [vmem:[%s194] sm:$0xff]
        %v231 = vld [vmem:[%s194 + $0x8] sm:$0xff]
        %v232 = vsub.f32 %v230, %v228
        %v233 = vsub.f32 %v231, %v229
        %v234 = vsub.f32 %v228, %v230
        %v235 = vsub.f32 %v229, %v231
        %v236 = vmax.f32 %v234, 0.0
        %v237 = vmax.f32 %v235, 0.0
        %v238 = vmul.f32 %v232, 1.5
        %v239 = vmul.f32 %v233, 1.5
        %v240 = vmul.f32 %v236, 3.0
        %v241 = vmul.f32 %v237, 3.0
        %v242 = vadd.f32 %v238, %v240
        %v243 = vadd.f32 %v239, %v241
        %v244 = vld [vmem:[#allocation2] sm:$0xff]
        %v245 = vadd.f32 %v242, %v243
        %v246 = vadd.f32 %v244, %v245
        %247 = vst [vmem:[#allocation2] sm:$0xff] %v246
        // Predicated region
        $region41: #{tpu_custom_call.1} parent=27 // pred_check
          %p248 = pneg %p223
        $region42: #{tpu_custom_call.1} parent=27 // pred_check_branch
          %250 = sbr.rel (%p248) target = $region44
        $region43: #{tpu_custom_call.1} parent=27 // pred_region
          %v251 = vld [vmem:[#allocation2] sm:$0xff]
          %v252 = vrot.slane %v251, 4
          %v253 = vadd.f32 %v251, %v252
          %v254 = vrot.slane %v253, 2
          %v255 = vadd.f32 %v253, %v254
          %v256 = vrot.slane %v255, 1
          %v257 = vadd.f32 %v255, %v256
          %258 = vst [vmem:[%s218] sm:$0x1] %v257
        $region44: #{tpu_custom_call.1} parent=27 // pred_fallthru
          _
        %s259 = sand.u32 %s98, 1
        %s260 = scalar_lea.sflag [#allocation5], %s259
        %s261 = sand.u32 %s98, 1
        %s262 = scalar_lea.vmem [#allocation8], %s261
        // Predicated region
        $region45: #{tpu_custom_call.1} parent=27 // pred_check
          %p263 = pneg %p108
        $region46: #{tpu_custom_call.1} parent=27 // pred_check_branch
          %265 = sbr.rel (%p263) target = $region48
        $region47: #{tpu_custom_call.1} parent=27 // pred_region
          %s267 = ssub.s32 16, 16
          %268 = vsyncadd %s260, %s267
          %s269 = smul.addr %s26, 16
          %s270 = scalar_lea.hbm %s2, %s269
          %s272 = sshll.u32 %s262, 4
          %s273 = int_to_ptr.vmem [resolvable:$true] %s272
          %275 = dma.vmem_to_hbm [thread:$0]  %s273, 16, %s270, %s260
        $region48: #{tpu_custom_call.1} parent=27 // pred_fallthru
          _
      $region28: #{tpu_custom_call.1} parent=5 // pred_fallthru
        _
      %p276 = scmp.le.s32.totalorder 2, %s17
      // Predicated region
      $region49: #{tpu_custom_call.1} parent=5 // pred_check
        %p277 = pneg %p276
      $region50: #{tpu_custom_call.1} parent=5 // pred_check_branch
        %279 = sbr.rel (%p277) target = $region52
      $region51: #{tpu_custom_call.1} parent=5 // pred_region
        %s280 = ssub.s32 %s17, 2
        // Predicated region
        $region53: #{tpu_custom_call.1} parent=51 // pred_check
          %p281 = pneg %p114
        $region54: #{tpu_custom_call.1} parent=51 // pred_check_branch
          %283 = sbr.rel (%p281) target = $region56
        $region55: #{tpu_custom_call.1} parent=51 // pred_region
          %s284 = sand.u32 %s99, 1
          %s285 = scalar_lea.sflag [#allocation5], %s284
          %s286 = sand.u32 %s99, 1
          %s287 = scalar_lea.vmem [#allocation8], %s286
          %288 = dma.done %s285, 16
        $region56: #{tpu_custom_call.1} parent=51 // pred_fallthru
          _
      $region52: #{tpu_custom_call.1} parent=5 // pred_fallthru
        _
    $region6: #{tpu_custom_call.1} parent=1 // loop_footer
      %s21 = sadd.s32 1, %s17
    $region7: #{tpu_custom_call.1} parent=1 // loop_footer_branch
      %16 = sbr.rel target = $region3
    $region8: #{tpu_custom_call.1} parent=1 // loop_exit
      _
    %289 = vsyncpa [#allocation4], 1
    %s290 = scalar_lea.sflag [#allocation4], 1
    %291 = vsyncpa %s290, 1
    %292 = vsyncpa [#allocation7], 1
    %s293 = scalar_lea.sflag [#allocation7], 1
    %294 = vsyncpa %s293, 1
    %295 = vsyncpa [#allocation5], 1
    %s296 = scalar_lea.sflag [#allocation5], 1
    %297 = vsyncpa %s296, 1

</llo_original>
